<compile_context>
chip_gen: v5e
topology: v5e:2x2
jax: 0.10.0
libtpu: 0.0.40
codegen_flags: <defaults>
</compile_context>

<pallas_src>
import math
import functools
from typing import NamedTuple

import jax
import jax.numpy as jnp
from jax.experimental import pallas as pl
from jax.experimental.pallas import tpu as pltpu


# ------------------------------------------------------------------ static metadata

class _Meta(NamedTuple):
    bcc: int    # B * in_channels_centers
    bccf: int   # B * out_channels_centerFace
    bcf: int    # B * in_channels_faces
    bco: int    # B * out_channels
    o_wcf: int  # row offsets inside the packed f32 param array
    o_bcf: int
    o_bfp: int
    o_bpp: int
    o_fpa: int  # row offsets inside the packed bf16 param array
    o_fpb: int
    o_nbr: int
    o_self: int


def _round_up(x, m):
    return (x + m - 1) // m * m


def _block_diag(w, b):
    cin, cout = w.shape
    out = jnp.zeros((b * cin, b * cout), w.dtype)
    for i in range(b):
        out = out.at[i * cin:(i + 1) * cin, i * cout:(i + 1) * cout].set(w)
    return out


def _pack_rows(arrs, dtype, align):
    """Stack small 2-D params vertically (row offsets aligned) into one VMEM block."""
    cols = max(a.shape[1] for a in arrs)
    offs, r = [], 0
    for a in arrs:
        offs.append(r)
        r = _round_up(r + a.shape[0], align)
    packed = jnp.zeros((_round_up(r, align), cols), dtype)
    for a, o in zip(arrs, offs):
        packed = packed.at[o:o + a.shape[0], :a.shape[1]].set(a.astype(dtype))
    return packed, offs


# ------------------------------------------------------------------ fused kernel

def _conv_block1_kernel(xcc_ref, xf_ref,
                        a_cf_ref, a_fp_ref, a_pp_ref,
                        pf32_ref, pb16_ref,
                        o_ref, *, m: _Meta):
    f32, bf16 = jnp.float32, jnp.bfloat16

    # ---- layerCenterFace -------------------------------------------------
    # Projection xcc @ W_cf has K = B*Cc (= 4): too skinny for the MXU, do it
    # as a few broadcast FMAs on the VPU instead (f32 throughout).
    xcc = xcc_ref[...]                                       # (Nc, B*Cc)  f32
    w_cf = pf32_ref[m.o_wcf:m.o_wcf + m.bcc, 0:m.bccf]       # (B*Cc, B*Ccf) f32
    proj = xcc[:, 0:1] * w_cf[0:1, :]
    for k in range(1, m.bcc):
        proj = proj + xcc[:, k:k + 1] * w_cf[k:k + 1, :]     # (Nc, B*Ccf)  f32

    b_cf = pf32_ref[m.o_bcf:m.o_bcf + 1, 0:m.bccf]           # (1, B*Ccf)   f32
    h_face = jnp.dot(a_cf_ref[...], proj.astype(bf16),
                     preferred_element_type=f32)             # (Nf, B*Ccf)  f32
    h_face = jnp.maximum(h_face + b_cf, 0.0)

    # ---- layerFacePoint (concat eliminated: W_fp split in the wrapper) ----
    w_fp_a = pb16_ref[m.o_fpa:m.o_fpa + m.bccf, 0:m.bco]     # (B*Ccf, B*Co) bf16
    w_fp_b = pb16_ref[m.o_fpb:m.o_fpb + m.bcf, 0:m.bco]      # (B*Cf,  B*Co) bf16
    msg = (jnp.dot(h_face.astype(bf16), w_fp_a, preferred_element_type=f32)
           + jnp.dot(xf_ref[...], w_fp_b, preferred_element_type=f32))
    b_fp = pf32_ref[m.o_bfp:m.o_bfp + 1, 0:m.bco]
    h_pt = jnp.dot(a_fp_ref[...], msg.astype(bf16),
                   preferred_element_type=f32)               # (Np, B*Co)
    h_pt = jnp.maximum(h_pt + b_fp, 0.0)

    # ---- layerPointPoint (two separate dots; no in-vreg [Wn|Ws] split) ----
    w_nbr = pb16_ref[m.o_nbr:m.o_nbr + m.bco, 0:m.bco]
    w_self = pb16_ref[m.o_self:m.o_self + m.bco, 0:m.bco]
    h_pt16 = h_pt.astype(bf16)
    nbr = jnp.dot(h_pt16, w_nbr, preferred_element_type=f32)
    slf = jnp.dot(h_pt16, w_self, preferred_element_type=f32)
    agg = jnp.dot(a_pp_ref[...], nbr.astype(bf16), preferred_element_type=f32)
    b_pp = pf32_ref[m.o_bpp:m.o_bpp + 1, 0:m.bco]
    o_ref[...] = jnp.maximum(agg + slf + b_pp, 0.0)          # (Np, B*Co) f32


# ------------------------------------------------------------------ builder / wrapper

def make_conv_block1(graphs, params, batch):
    """Pre-pack weights & adjacencies once; return a jitted fn (xcc, xf) -> out."""
    B = batch
    w_cf, b_cf = params['centerFace']
    w_fp, b_fp = params['facePoint']
    w_nbr, w_self, b_pp = params['pointPoint']

    cc, c_cf = w_cf.shape                 # in_channels_centers, out_channels_centerFace
    cf = w_fp.shape[0] - c_cf             # in_channels_faces
    c_out = w_nbr.shape[1]

    nf, nc = graphs['centerFace'].shape
    np_ = graphs['pointPoint'].shape[0]

    # split W_fp so the lane-axis concat never happens in-kernel
    w_fp_a, w_fp_b = w_fp[:c_cf], w_fp[c_cf:]

    # batch-shared weights -> block-diagonal so the batch rides the lane axis
    bd = lambda w: _block_diag(w, B)
    tile = lambda v: jnp.tile(v.reshape(1, -1), (1, B))

    pf32, (o_wcf, o_bcf, o_bfp, o_bpp) = _pack_rows(
        [bd(w_cf), tile(b_cf), tile(b_fp), tile(b_pp)], jnp.float32, 8)
    pb16, (o_fpa, o_fpb, o_nbr, o_self) = _pack_rows(
        [bd(w_fp_a), bd(w_fp_b), bd(w_nbr), bd(w_self)], jnp.bfloat16, 16)

    # adjacencies: MXU operands -> bf16 (halves HBM->VMEM bytes at real sizes)
    a_cf = graphs['centerFace'].astype(jnp.bfloat16)   # (Nf, Nc)
    a_fp = graphs['facePoint'].astype(jnp.bfloat16)    # (Np, Nf)
    a_pp = graphs['pointPoint'].astype(jnp.bfloat16)   # (Np, Np)
    # TODO(synk): at real mesh sizes tile the A_fp / A_pp matmuls with BlockSpecs
    #             (row x col tiles, reduction axis "arbitrary"); dense Np^2 would
    #             not fit v7x's 64 MiB VMEM as a full-array block.

    meta = _Meta(bcc=B * cc, bccf=B * c_cf, bcf=B * cf, bco=B * c_out,
                 o_wcf=o_wcf, o_bcf=o_bcf, o_bfp=o_bfp, o_bpp=o_bpp,
                 o_fpa=o_fpa, o_fpb=o_fpb, o_nbr=o_nbr, o_self=o_self)

    kernel = functools.partial(_conv_block1_kernel, m=meta)

    def full(shape):
        nd = len(shape)
        return pl.BlockSpec(shape, lambda *_: (0,) * nd)

    call = pl.pallas_call(
        kernel,
        out_shape=jax.ShapeDtypeStruct((np_, B * c_out), jnp.float32),
        in_specs=[
            full((nc, B * cc)),          # xCellCenters, lane-stacked batch (f32)
            full((nf, B * cf)),          # xFace, lane-stacked batch (bf16)
            full(a_cf.shape), full(a_fp.shape), full(a_pp.shape),
            full(pf32.shape),            # packed f32 params (VPU weight + biases)
            full(pb16.shape),            # packed bf16 params (MXU weights)
        ],
        out_specs=full((np_, B * c_out)),
        compiler_params=pltpu.CompilerParams(vmem_limit_bytes=32 * 1024 * 1024),
    )

    @jax.jit
    def forward(xcc, xf):
        # (B, N, C) -> (N, B*C): batch folded onto the lane axis
        xcc_flat = jnp.transpose(xcc, (1, 0, 2)).reshape(nc, B * cc)
        xf_flat = jnp.transpose(xf, (1, 0, 2)).reshape(nf, B * cf).astype(jnp.bfloat16)
        out = call(xcc_flat, xf_flat, a_cf, a_fp, a_pp, pf32, pb16)
        return jnp.transpose(out.reshape(np_, B, c_out), (1, 0, 2))

    return forward


# ------------------------------------------------------------------ pure-JAX reference

def conv_block1_reference(xcc, xf, graphs, params):
    """Mirror of the module; MXU operands cast to bf16 exactly like the kernel."""
    bf16, f32 = jnp.bfloat16, jnp.float32
    w_cf, b_cf = params['centerFace']
    w_fp, b_fp = params['facePoint']
    w_nbr, w_self, b_pp = params['pointPoint']
    a_cf, a_fp, a_pp = (graphs['centerFace'], graphs['facePoint'],
                        graphs['pointPoint'])

    def bdot(a, b):
        return jnp.dot(a.astype(bf16), b.astype(bf16), preferred_element_type=f32)

    def single(xc, xfa):
        h = jax.nn.relu(bdot(a_cf, xc @ w_cf) + b_cf)
        x = jnp.concatenate([h, xfa], axis=-1)
        x = jax.nn.relu(bdot(a_fp, bdot(x, w_fp)) + b_fp)
        x = jax.nn.relu(bdot(a_pp, bdot(x, w_nbr)) + bdot(x, w_self) + b_pp)
        return x

    return jax.vmap(single)(xcc, xf)


# ------------------------------------------------------------------ params / graphs

def _lin_init(key, cin, cout):
    k1, k2 = jax.random.split(key)
    bound = 1.0 / math.sqrt(cin)
    w = jax.random.uniform(k1, (cin, cout), jnp.float32, -bound, bound)
    b = jax.random.uniform(k2, (1, cout), jnp.float32, -bound, bound)
    return w, b


def build_params(key, c_centers, c_faces, c_center_face, c_out):
    k1, k2, k3, k4 = jax.random.split(key, 4)
    w_cf, b_cf = _lin_init(k1, c_centers, c_center_face)                  # 2 -> 9
    w_fp, b_fp = _lin_init(k2, c_center_face + c_faces, c_out)            # 12 -> 12
    w_nbr, b_pp = _lin_init(k3, c_out, c_out)                             # 12 -> 12
    w_self, _ = _lin_init(k4, c_out, c_out)
    return {
        'centerFace': (w_cf, b_cf),
        'facePoint': (w_fp, b_fp),
        'pointPoint': (w_nbr, w_self, b_pp),
    }


def build_graphs(key, nc, nf, npts):
    keys = jax.random.split(key, 6)

    def adj(kw, km, n_dst, n_src):
        # dense weighted adjacency (edge_attr folded in), lightly sparsified
        w = jax.random.uniform(kw, (n_dst, n_src), jnp.float32, 0.0, 1.0)
        mask = (jax.random.uniform(km, (n_dst, n_src)) < 0.3).astype(jnp.float32)
        return w * mask * 0.25

    return {
        'centerFace': adj(keys[0], keys[1], nf, nc),     # centers -> faces
        'facePoint': adj(keys[2], keys[3], npts, nf),    # faces   -> points
        'pointPoint': adj(keys[4], keys[5], npts, npts)  # points  -> points
    }


# ------------------------------------------------------------------ main

if __name__ == "__main__":
    B = 2
    Nc, Nf, Np_ = 32, 48, 40                 # cell centers, faces, points
    Cc, Cf = 2, 3                            # in_channels_centers, in_channels_faces
    C_cf, C_out = 9, 12                      # out_channels_centerFace, out_channels

    key = jax.random.PRNGKey(0)
    k_in1, k_in2, k_par, k_gph = jax.random.split(key, 4)

    x_cell_centers = jax.random.normal(k_in1, (B, Nc, Cc), jnp.float32)
    x_face = jax.random.normal(k_in2, (B, Nf, Cf), jnp.float32)

    params = build_params(k_par, Cc, Cf, C_cf, C_out)
    graphs = build_graphs(k_gph, Nc, Nf, Np_)

    forward = make_conv_block1(graphs, params, B)
    out = jax.block_until_ready(forward(x_cell_centers, x_face))

    ref = conv_block1_reference(x_cell_centers, x_face, graphs, params)

    assert out.shape == (B, Np_, C_out), out.shape
    assert bool(jnp.all(jnp.isfinite(out)))
    max_err = float(jnp.max(jnp.abs(out - ref)))
    assert bool(jnp.allclose(out, ref, atol=1e-2, rtol=1e-2)), max_err
    print("KERNEL_OK")
</pallas_src>

<mosaic_0001>
module attributes {stable_mosaic.version = 11 : i64} {
  func.func @_conv_block1_kernel(%arg0: memref<32x4xf32, #tpu.memory_space<vmem>>, %arg1: memref<48x6xbf16, #tpu.memory_space<vmem>>, %arg2: memref<48x32xbf16, #tpu.memory_space<vmem>>, %arg3: memref<40x48xbf16, #tpu.memory_space<vmem>>, %arg4: memref<40x40xbf16, #tpu.memory_space<vmem>>, %arg5: memref<32x24xf32, #tpu.memory_space<vmem>>, %arg6: memref<112x24xbf16, #tpu.memory_space<vmem>>, %arg7: memref<40x24xf32, #tpu.memory_space<vmem>>) attributes {dimension_semantics = [], scalar_prefetch = 0 : i64, scratch_operands = 0 : i64, tpu.core_type = #tpu.core_type<tc>} {
    %c0 = arith.constant 0 : index
    %c0_0 = arith.constant 0 : index
    %0 = vector.load %arg0[%c0, %c0_0] : memref<32x4xf32, #tpu.memory_space<vmem>>, vector<32x4xf32>
    %c0_1 = arith.constant 0 : index
    %c0_2 = arith.constant 0 : index
    %1 = vector.load %arg5[%c0_1, %c0_2] : memref<32x24xf32, #tpu.memory_space<vmem>>, vector<4x18xf32>
    %2 = vector.extract_strided_slice %0 {offsets = [0, 0], sizes = [32, 1], strides = [1, 1]} : vector<32x4xf32> to vector<32x1xf32>
    %3 = vector.extract_strided_slice %1 {offsets = [0, 0], sizes = [1, 18], strides = [1, 1]} : vector<4x18xf32> to vector<1x18xf32>
    %4 = vector.broadcast %2 : vector<32x1xf32> to vector<32x18xf32>
    %5 = vector.broadcast %3 : vector<1x18xf32> to vector<32x18xf32>
    %6 = arith.mulf %4, %5 : vector<32x18xf32>
    %7 = vector.extract_strided_slice %0 {offsets = [0, 1], sizes = [32, 1], strides = [1, 1]} : vector<32x4xf32> to vector<32x1xf32>
    %8 = vector.extract_strided_slice %1 {offsets = [1, 0], sizes = [1, 18], strides = [1, 1]} : vector<4x18xf32> to vector<1x18xf32>
    %9 = vector.broadcast %7 : vector<32x1xf32> to vector<32x18xf32>
    %10 = vector.broadcast %8 : vector<1x18xf32> to vector<32x18xf32>
    %11 = arith.mulf %9, %10 : vector<32x18xf32>
    %12 = arith.addf %6, %11 : vector<32x18xf32>
    %13 = vector.extract_strided_slice %0 {offsets = [0, 2], sizes = [32, 1], strides = [1, 1]} : vector<32x4xf32> to vector<32x1xf32>
    %14 = vector.extract_strided_slice %1 {offsets = [2, 0], sizes = [1, 18], strides = [1, 1]} : vector<4x18xf32> to vector<1x18xf32>
    %15 = vector.broadcast %13 : vector<32x1xf32> to vector<32x18xf32>
    %16 = vector.broadcast %14 : vector<1x18xf32> to vector<32x18xf32>
    %17 = arith.mulf %15, %16 : vector<32x18xf32>
    %18 = arith.addf %12, %17 : vector<32x18xf32>
    %19 = vector.extract_strided_slice %0 {offsets = [0, 3], sizes = [32, 1], strides = [1, 1]} : vector<32x4xf32> to vector<32x1xf32>
    %20 = vector.extract_strided_slice %1 {offsets = [3, 0], sizes = [1, 18], strides = [1, 1]} : vector<4x18xf32> to vector<1x18xf32>
    %21 = vector.broadcast %19 : vector<32x1xf32> to vector<32x18xf32>
    %22 = vector.broadcast %20 : vector<1x18xf32> to vector<32x18xf32>
    %23 = arith.mulf %21, %22 : vector<32x18xf32>
    %24 = arith.addf %18, %23 : vector<32x18xf32>
    %c8 = arith.constant 8 : index
    %c0_3 = arith.constant 0 : index
    %25 = vector.load %arg5[%c8, %c0_3] : memref<32x24xf32, #tpu.memory_space<vmem>>, vector<1x18xf32>
    %c0_4 = arith.constant 0 : index
    %c0_5 = arith.constant 0 : index
    %26 = vector.load %arg2[%c0_4, %c0_5] : memref<48x32xbf16, #tpu.memory_space<vmem>>, vector<48x32xbf16>
    %27 = arith.truncf %24 : vector<32x18xf32> to vector<32x18xbf16>
    %cst = arith.constant dense<0.000000e+00> : vector<48x18xf32>
    %28 = tpu.matmul %26, %27, %cst {dimension_numbers = #tpu.dot_dimension_numbers<[1], [0], [0], [1], [0, 0, 1, 1], [], []>} : vector<48x32xbf16>, vector<32x18xbf16>, vector<48x18xf32> -> vector<48x18xf32>
    %29 = vector.broadcast %25 : vector<1x18xf32> to vector<48x18xf32>
    %30 = arith.addf %28, %29 : vector<48x18xf32>
    %cst_6 = arith.constant 0.000000e+00 : f32
    %31 = vector.broadcast %cst_6 : f32 to vector<48x18xf32>
    %32 = arith.maximumf %30, %31 : vector<48x18xf32>
    %c0_7 = arith.constant 0 : index
    %c0_8 = arith.constant 0 : index
    %33 = vector.load %arg6[%c0_7, %c0_8] : memref<112x24xbf16, #tpu.memory_space<vmem>>, vector<18x24xbf16>
    %c32 = arith.constant 32 : index
    %c0_9 = arith.constant 0 : index
    %34 = vector.load %arg6[%c32, %c0_9] : memref<112x24xbf16, #tpu.memory_space<vmem>>, vector<6x24xbf16>
    %35 = arith.truncf %32 : vector<48x18xf32> to vector<48x18xbf16>
    %cst_10 = arith.constant dense<0.000000e+00> : vector<48x24xf32>
    %36 = tpu.matmul %35, %33, %cst_10 {dimension_numbers = #tpu.dot_dimension_numbers<[1], [0], [0], [1], [0, 0, 1, 1], [], []>} : vector<48x18xbf16>, vector<18x24xbf16>, vector<48x24xf32> -> vector<48x24xf32>
    %c0_11 = arith.constant 0 : index
    %c0_12 = arith.constant 0 : index
    %37 = vector.load %arg1[%c0_11, %c0_12] : memref<48x6xbf16, #tpu.memory_space<vmem>>, vector<48x6xbf16>
    %cst_13 = arith.constant dense<0.000000e+00> : vector<48x24xf32>
    %38 = tpu.matmul %37, %34, %cst_13 {dimension_numbers = #tpu.dot_dimension_numbers<[1], [0], [0], [1], [0, 0, 1, 1], [], []>} : vector<48x6xbf16>, vector<6x24xbf16>, vector<48x24xf32> -> vector<48x24xf32>
    %39 = arith.addf %36, %38 : vector<48x24xf32>
    %c16 = arith.constant 16 : index
    %c0_14 = arith.constant 0 : index
    %40 = vector.load %arg5[%c16, %c0_14] : memref<32x24xf32, #tpu.memory_space<vmem>>, vector<1x24xf32>
    %c0_15 = arith.constant 0 : index
    %c0_16 = arith.constant 0 : index
    %41 = vector.load %arg3[%c0_15, %c0_16] : memref<40x48xbf16, #tpu.memory_space<vmem>>, vector<40x48xbf16>
    %42 = arith.truncf %39 : vector<48x24xf32> to vector<48x24xbf16>
    %cst_17 = arith.constant dense<0.000000e+00> : vector<40x24xf32>
    %43 = tpu.matmul %41, %42, %cst_17 {dimension_numbers = #tpu.dot_dimension_numbers<[1], [0], [0], [1], [0, 0, 1, 1], [], []>} : vector<40x48xbf16>, vector<48x24xbf16>, vector<40x24xf32> -> vector<40x24xf32>
    %44 = vector.broadcast %40 : vector<1x24xf32> to vector<40x24xf32>
    %45 = arith.addf %43, %44 : vector<40x24xf32>
    %cst_18 = arith.constant 0.000000e+00 : f32
    %46 = vector.broadcast %cst_18 : f32 to vector<40x24xf32>
    %47 = arith.maximumf %45, %46 : vector<40x24xf32>
    %c48 = arith.constant 48 : index
    %c0_19 = arith.constant 0 : index
    %48 = vector.load %arg6[%c48, %c0_19] : memref<112x24xbf16, #tpu.memory_space<vmem>>, vector<24x24xbf16>
    %c80 = arith.constant 80 : index
    %c0_20 = arith.constant 0 : index
    %49 = vector.load %arg6[%c80, %c0_20] : memref<112x24xbf16, #tpu.memory_space<vmem>>, vector<24x24xbf16>
    %50 = arith.truncf %47 : vector<40x24xf32> to vector<40x24xbf16>
    %cst_21 = arith.constant dense<0.000000e+00> : vector<40x24xf32>
    %51 = tpu.matmul %50, %48, %cst_21 {dimension_numbers = #tpu.dot_dimension_numbers<[1], [0], [0], [1], [0, 0, 1, 1], [], []>} : vector<40x24xbf16>, vector<24x24xbf16>, vector<40x24xf32> -> vector<40x24xf32>
    %cst_22 = arith.constant dense<0.000000e+00> : vector<40x24xf32>
    %52 = tpu.matmul %50, %49, %cst_22 {dimension_numbers = #tpu.dot_dimension_numbers<[1], [0], [0], [1], [0, 0, 1, 1], [], []>} : vector<40x24xbf16>, vector<24x24xbf16>, vector<40x24xf32> -> vector<40x24xf32>
    %c0_23 = arith.constant 0 : index
    %c0_24 = arith.constant 0 : index
    %53 = vector.load %arg4[%c0_23, %c0_24] : memref<40x40xbf16, #tpu.memory_space<vmem>>, vector<40x40xbf16>
    %54 = arith.truncf %51 : vector<40x24xf32> to vector<40x24xbf16>
    %cst_25 = arith.constant dense<0.000000e+00> : vector<40x24xf32>
    %55 = tpu.matmul %53, %54, %cst_25 {dimension_numbers = #tpu.dot_dimension_numbers<[1], [0], [0], [1], [0, 0, 1, 1], [], []>} : vector<40x40xbf16>, vector<40x24xbf16>, vector<40x24xf32> -> vector<40x24xf32>
    %c24 = arith.constant 24 : index
    %c0_26 = arith.constant 0 : index
    %56 = vector.load %arg5[%c24, %c0_26] : memref<32x24xf32, #tpu.memory_space<vmem>>, vector<1x24xf32>
    %57 = arith.addf %55, %52 : vector<40x24xf32>
    %58 = vector.broadcast %56 : vector<1x24xf32> to vector<40x24xf32>
    %59 = arith.addf %57, %58 : vector<40x24xf32>
    %cst_27 = arith.constant 0.000000e+00 : f32
    %60 = vector.broadcast %cst_27 : f32 to vector<40x24xf32>
    %61 = arith.maximumf %59, %60 : vector<40x24xf32>
    %c0_28 = arith.constant 0 : index
    %c0_29 = arith.constant 0 : index
    %62 = vector.load %arg7[%c0_28, %c0_29] : memref<40x24xf32, #tpu.memory_space<vmem>>, vector<40x24xf32>
    tpu.vector_store %arg7[%c0_28, %c0_29], %61 {strides = array<i32>} : memref<40x24xf32, #tpu.memory_space<vmem>>, vector<40x24xf32>,
    return
  }
}

</mosaic_0001>

<llo_original>
// kernel: forward.1
$region0: #{forward.1}
  #allocation0 [shape = 'u32[]', space=smem, size = 0x4, offset = 0x4, fixed_abs, tag = 'smem constant byte address 0x4 - core index']
  #allocation1 [shape = 'u32[72,128]{1,0:T(1,128)}', space=vmem, size = 0x9000, scoped, tag = 'internal scratch']
  %s0 = inlined_call_operand.vmem [shape: f32[32,4], index: 0, kind: input, shape index: {}]
  %s1 = inlined_call_operand.vmem [shape: bf16[48,6], index: 1, kind: input, shape index: {}]
  %s2 = inlined_call_operand.hbm [shape: bf16[48,32], index: 2, kind: input, shape index: {}]
  %s3 = inlined_call_operand.hbm [shape: bf16[40,48], index: 3, kind: input, shape index: {}]
  %s4 = inlined_call_operand.hbm [shape: bf16[40,40], index: 4, kind: input, shape index: {}]
  %s5 = inlined_call_operand.vmem [shape: f32[32,24], index: 5, kind: input, shape index: {}]
  %s6 = inlined_call_operand.vmem [shape: bf16[112,24], index: 6, kind: input, shape index: {}]
  %s7 = inlined_call_operand.vmem [shape: f32[40,24], index: 7, kind: output, shape index: {}]
  %s8 = sld [smem:[#allocation0]]
  $region50: #{forward.1} parent=0
    _
  %s10 = ssub.s32 1, %s8
  %s11 = scalar_select 0, %s10, %s8
  $region1: #{forward.1} parent=0
    #allocation2 [shape = 'u8[12288]{0}', space=vmem, size = 0x3000, scoped, tag = 'input window, operand 2, single buffered']
    #allocation3 [shape = 's32[1]{0}', space=sflag, size = 0x4, scoped, tag = 'scoped memory for forward.1']
    #allocation4 [shape = 'u8[10240]{0}', space=vmem, size = 0x2800, scoped, tag = 'input window, operand 3, single buffered']
    #allocation5 [shape = 's32[1]{0}', space=sflag, size = 0x4, scoped, tag = 'scoped memory for forward.1']
    #allocation6 [shape = 'u8[10240]{0}', space=vmem, size = 0x2800, scoped, tag = 'input window, operand 4, single buffered']
    %12 = vsyncpa [#allocation3], 0
    %13 = vsyncpa [#allocation5], 0
    // Predicated region
    $region2: #{forward.1} parent=1 // pred_check
      _
    $region3: #{forward.1} parent=1 // pred_check_branch
      %15 = sbr.rel (0) target = $region5
    $region4: #{forward.1} parent=1 // pred_region
      _
    $region5: #{forward.1} parent=1 // pred_fallthru
      _
    // Predicated region
    $region6: #{forward.1} parent=1 // pred_check
      _
    $region7: #{forward.1} parent=1 // pred_check_branch
      %17 = sbr.rel (0) target = $region9
    $region8: #{forward.1} parent=1 // pred_region
      _
    $region9: #{forward.1} parent=1 // pred_fallthru
      _
    // Predicated region
    $region10: #{forward.1} parent=1 // pred_check
      _
    $region11: #{forward.1} parent=1 // pred_check_branch
      %19 = sbr.rel (0) target = $region13
    $region12: #{forward.1} parent=1 // pred_region
      %21 = vsyncadd [#allocation3], 0
      %s22 = sshll.u32 %s2, 4
      %s23 = int_to_ptr.hbm [resolvable:$true] %s22
      %s24 = sshll.u32 [#allocation2], 4
      %s25 = int_to_ptr.vmem [resolvable:$true] %s24
      %30 = dma.hbm_to_vmem [thread:$0]  %s23, 384, %s25, [#allocation3], 64, 64, 4
    $region13: #{forward.1} parent=1 // pred_fallthru
      _
    // Predicated region
    $region14: #{forward.1} parent=1 // pred_check
      _
    $region15: #{forward.1} parent=1 // pred_check_branch
      %32 = sbr.rel (0) target = $region17
    $region16: #{forward.1} parent=1 // pred_region
      %34 = vsyncadd [#allocation5], 0
      %s35 = sshll.u32 %s3, 4
      %s36 = int_to_ptr.hbm [resolvable:$true] %s35
      %s37 = sshll.u32 [#allocation4], 4
      %s38 = int_to_ptr.vmem [resolvable:$true] %s37
      %43 = dma.hbm_to_vmem [thread:$0]  %s36, 320, %s38, [#allocation5], 64, 64, 4
    $region17: #{forward.1} parent=1 // pred_fallthru
      _
    // Predicated region
    $region18: #{forward.1} parent=1 // pred_check
      _
    $region19: #{forward.1} parent=1 // pred_check_branch
      %45 = sbr.rel (0) target = $region21
    $region20: #{forward.1} parent=1 // pred_region
      %47 = vsyncadd [#allocation5], 0
      %s48 = sshll.u32 %s4, 4
      %s49 = int_to_ptr.hbm [resolvable:$true] %s48
      %s50 = sshll.u32 [#allocation6], 4
      %s51 = int_to_ptr.vmem [resolvable:$true] %s50
      %56 = dma.hbm_to_vmem [thread:$0]  %s49, 320, %s51, [#allocation5], 64, 64, 4
    $region21: #{forward.1} parent=1 // pred_fallthru
      _
    // Predicated region
    $region22: #{forward.1} parent=1 // pred_check
      _
    $region23: #{forward.1} parent=1 // pred_check_branch
      %58 = sbr.rel (0) target = $region25
    $region24: #{forward.1} parent=1 // pred_region
      _
    $region25: #{forward.1} parent=1 // pred_fallthru
      _
    // Predicated region
    $region26: #{forward.1} parent=1 // pred_check
      _
    $region27: #{forward.1} parent=1 // pred_check_branch
      %60 = sbr.rel (0) target = $region29
    $region28: #{forward.1} parent=1 // pred_region
      _
    $region29: #{forward.1} parent=1 // pred_fallthru
      _
    // Predicated region
    $region30: #{forward.1} parent=1 // pred_check
      _
    $region31: #{forward.1} parent=1 // pred_check_branch
      %62 = sbr.rel (0) target = $region33
    $region32: #{forward.1} parent=1 // pred_region
      %64 = dma.done [#allocation3], 384
    $region33: #{forward.1} parent=1 // pred_fallthru
      _
    // Predicated region
    $region34: #{forward.1} parent=1 // pred_check
      _
    $region35: #{forward.1} parent=1 // pred_check_branch
      %66 = sbr.rel (0) target = $region37
    $region36: #{forward.1} parent=1 // pred_region
      %68 = dma.done [#allocation5], 320
    $region37: #{forward.1} parent=1 // pred_fallthru
      _
    // Predicated region
    $region38: #{forward.1} parent=1 // pred_check
      _
    $region39: #{forward.1} parent=1 // pred_check_branch
      %70 = sbr.rel (0) target = $region41
    $region40: #{forward.1} parent=1 // pred_region
      %72 = dma.done [#allocation5], 320
    $region41: #{forward.1} parent=1 // pred_fallthru
      _
    %v74 = vld [vmem:[%s0] sm:$0xff]
    %v75 = vld [vmem:[%s0 + $0x8] sm:$0xff]
    %v76 = vld [vmem:[%s0 + $0x10] sm:$0xff]
    %v77 = vld [vmem:[%s0 + $0x18] sm:$0xff]
    %v78 = vld [vmem:[%s5] sm:$0xf]
    %80 = vset.pattern.permute.xlu0 0
    %81 = vperm.xlu0 %80, %v74
    %v82 = vpop.permute.xlu0 %81
    %85 = vset.pattern.permute.xlu0 0
    %86 = vperm.xlu0 %85, %v75
    %v87 = vpop.permute.xlu0 %86
    %90 = vset.pattern.permute.xlu0 0
    %91 = vperm.xlu0 %90, %v76
    %v92 = vpop.permute.xlu0 %91
    %95 = vset.pattern.permute.xlu0 0
    %96 = vperm.xlu0 %95, %v77
    %v97 = vpop.permute.xlu0 %96
    %v99 = vperm.slane %v78, 0
    %v100 = vmul.f32 %v82, %v99
    %v101 = vmul.f32 %v87, %v99
    %v102 = vmul.f32 %v92, %v99
    %v103 = vmul.f32 %v97, %v99
    %104 = vset.pattern.permute.xlu0 1
    %105 = vperm.xlu0 %104, %v74
    %v106 = vpop.permute.xlu0 %105
    %108 = vset.pattern.permute.xlu0 1
    %109 = vperm.xlu0 %108, %v75
    %v110 = vpop.permute.xlu0 %109
    %112 = vset.pattern.permute.xlu0 1
    %113 = vperm.xlu0 %112, %v76
    %v114 = vpop.permute.xlu0 %113
    %116 = vset.pattern.permute.xlu0 1
    %117 = vperm.xlu0 %116, %v77
    %v118 = vpop.permute.xlu0 %117
    %v120 = vperm.slane %v78, 1
    %v121 = vmul.f32 %v106, %v120
    %v122 = vmul.f32 %v110, %v120
    %v123 = vmul.f32 %v114, %v120
    %v124 = vmul.f32 %v118, %v120
    %v125 = vadd.f32 %v100, %v121
    %v126 = vadd.f32 %v101, %v122
    %v127 = vadd.f32 %v102, %v123
    %v128 = vadd.f32 %v103, %v124
    %129 = vset.pattern.permute.xlu0 2
    %130 = vperm.xlu0 %129, %v74
    %v131 = vpop.permute.xlu0 %130
    %133 = vset.pattern.permute.xlu0 2
    %134 = vperm.xlu0 %133, %v75
    %v135 = vpop.permute.xlu0 %134
    %137 = vset.pattern.permute.xlu0 2
    %138 = vperm.xlu0 %137, %v76
    %v139 = vpop.permute.xlu0 %138
    %141 = vset.pattern.permute.xlu0 2
    %142 = vperm.xlu0 %141, %v77
    %v143 = vpop.permute.xlu0 %142
    %v145 = vperm.slane %v78, 2
    %v146 = vmul.f32 %v131, %v145
    %v147 = vmul.f32 %v135, %v145
    %v148 = vmul.f32 %v139, %v145
    %v149 = vmul.f32 %v143, %v145
    %v150 = vadd.f32 %v125, %v146
    %v151 = vadd.f32 %v126, %v147
    %v152 = vadd.f32 %v127, %v148
    %v153 = vadd.f32 %v128, %v149
    %154 = vset.pattern.permute.xlu0 3
    %155 = vperm.xlu0 %154, %v74
    %v156 = vpop.permute.xlu0 %155
    %158 = vset.pattern.permute.xlu0 3
    %159 = vperm.xlu0 %158, %v75
    %v160 = vpop.permute.xlu0 %159
    %162 = vset.pattern.permute.xlu0 3
    %163 = vperm.xlu0 %162, %v76
    %v164 = vpop.permute.xlu0 %163
    %166 = vset.pattern.permute.xlu0 3
    %167 = vperm.xlu0 %166, %v77
    %v168 = vpop.permute.xlu0 %167
    %v170 = vperm.slane %v78, 3
    %v171 = vmul.f32 %v156, %v170
    %v172 = vmul.f32 %v160, %v170
    %v173 = vmul.f32 %v164, %v170
    %v174 = vmul.f32 %v168, %v170
    %v175 = vadd.f32 %v150, %v171
    %v176 = vadd.f32 %v151, %v172
    %v177 = vadd.f32 %v152, %v173
    %v178 = vadd.f32 %v153, %v174
    %v179 = vld [vmem:[%s5 + $0x8] sm:$0x1]
    %v180 = vld [vmem:[#allocation2] sm:$0xf]
    %v181 = vld [vmem:[#allocation2 + $0x4] sm:$0xf]
    %v182 = vld [vmem:[#allocation2 + $0x8] sm:$0xf]
    %v183 = vld [vmem:[#allocation2 + $0xc] sm:$0xf]
    %v184 = vld [vmem:[#allocation2 + $0x10] sm:$0xf]
    %v185 = vld [vmem:[#allocation2 + $0x14] sm:$0xf]
    %v186 = vpack.c.bf16 %v176, %v175
    %v187 = vpack.c.bf16 %v178, %v177
    %v188 = vperm.slane %v179, 0
    %v195 = vunpack.c.l.b16 %v180
    %v196 = vunpack.c.l.b16 %v181
    %v197 = vunpack.c.l.b16 %v182
    %v198 = vunpack.c.l.b16 %v183
    %v199 = vunpack.c.l.b16 %v184
    %v200 = vunpack.c.l.b16 %v185
    %v201 = vpack.c.b16 %v196, %v195
    %v202 = vpack.c.b16 %v198, %v197
    %v203 = vpack.c.b16 %v200, %v199
    %vm204 = vcmask 261120
    %v206 = vsel %vm204, %v201, 0
    %v209 = vsel %vm204, %v202, 0
    %v212 = vsel %vm204, %v203, 0
    %214 = vmatpush.bf16.msra.mxu0 0
    %215 = vmatpush.bf16.msra.mxu0 0
    %216 = vmatpush.bf16.msra.mxu0 0
    %217 = vmatpush.bf16.msra.mxu0 0
    %218 = vmatpush.bf16.msra.mxu0 0
    %219 = vmatpush.bf16.msra.mxu0 0
    %220 = vmatpush.bf16.msra.mxu0 %v187
    %221 = vmatpush.bf16.msra.mxu0 %v186
    %222 = vmatmul.bf16.gmra.mxu0 %v206
    %v223 = vpop.f32.mrf.mxu0
    %v224 = vadd.f32 %v188, %v223
    %v225 = vpop.f32.mrf.mxu0
    %v226 = vadd.f32 %v188, %v225
    %227 = vmatmul.bf16.gmra.mxu0 %v209
    %v228 = vpop.f32.mrf.mxu0
    %v229 = vadd.f32 %v188, %v228
    %v230 = vpop.f32.mrf.mxu0
    %v231 = vadd.f32 %v188, %v230
    %232 = vmatmul.bf16.gmra.mxu0 %v212
    %v233 = vpop.f32.mrf.mxu0
    %v234 = vadd.f32 %v188, %v233
    %v235 = vpop.f32.mrf.mxu0
    %v236 = vadd.f32 %v188, %v235
    %237 = vdwg.mxu0
    %v238 = vmax.f32 %v224, 0.0
    %v239 = vmax.f32 %v226, 0.0
    %v240 = vmax.f32 %v229, 0.0
    %v241 = vmax.f32 %v231, 0.0
    %v242 = vmax.f32 %v234, 0.0
    %v243 = vmax.f32 %v236, 0.0
    %v244 = vld [vmem:[%s6] sm:$0xf]
    %v245 = vld [vmem:[%s6 + $0x4] sm:$0xf]
    %v246 = vld [vmem:[%s6 + $0x8] sm:$0x1]
    %v247 = vld [vmem:[%s6 + $0x10] sm:$0x7]
    %v248 = vpack.c.bf16 %v239, %v238
    %v249 = vpack.c.bf16 %v241, %v240
    %v250 = vpack.c.bf16 %v243, %v242
    %v251 = vld [vmem:[%s1] sm:$0xf]
    %v252 = vld [vmem:[%s1 + $0x4] sm:$0xf]
    %v253 = vld [vmem:[%s1 + $0x8] sm:$0xf]
    %v254 = vld [vmem:[%s1 + $0xc] sm:$0xf]
    %v255 = vld [vmem:[%s1 + $0x10] sm:$0xf]
    %v256 = vld [vmem:[%s1 + $0x14] sm:$0xf]
    %v263 = vunpack.c.l.b16 %v251
    %v264 = vunpack.c.l.b16 %v252
    %v265 = vunpack.c.l.b16 %v253
    %v266 = vunpack.c.l.b16 %v254
    %v267 = vunpack.c.l.b16 %v255
    %v268 = vunpack.c.l.b16 %v256
    %v269 = vpack.c.b16 %v264, %v263
    %v270 = vpack.c.b16 %v266, %v265
    %v271 = vpack.c.b16 %v268, %v267
    %vm272 = vcmask 48128
    %v274 = vsel %vm272, %v269, 0
    %v277 = vsel %vm272, %v270, 0
    %v280 = vsel %vm272, %v271, 0
    %vm282 = vcmask 1042432
    %v284 = vsel %vm282, %v247, 0
    %286 = vmatpush.bf16.msra.mxu0 0
    %287 = vmatpush.bf16.msra.mxu0 0
    %288 = vmatpush.bf16.msra.mxu0 0
    %289 = vmatpush.bf16.msra.mxu0 0
    %290 = vmatpush.bf16.msra.mxu0 0
    %291 = vmatpush.bf16.msra.mxu0 0
    %292 = vmatpush.bf16.msra.mxu0 0
    %293 = vmatpush.bf16.msra.mxu0 %v284
    %294 = vmatmul.bf16.gmra.mxu0 %v274
    %v295 = vpop.f32.mrf.mxu0
    %v296 = vadd.f32 0.0, %v295
    %v297 = vpop.f32.mrf.mxu0
    %v298 = vadd.f32 0.0, %v297
    %299 = vmatmul.bf16.gmra.mxu0 %v277
    %v300 = vpop.f32.mrf.mxu0
    %v301 = vadd.f32 0.0, %v300
    %v302 = vpop.f32.mrf.mxu0
    %v303 = vadd.f32 0.0, %v302
    %304 = vmatmul.bf16.gmra.mxu0 %v280
    %v305 = vpop.f32.mrf.mxu0
    %v306 = vadd.f32 0.0, %v305
    %v307 = vpop.f32.mrf.mxu0
    %v308 = vadd.f32 0.0, %v307
    %309 = vdwg.mxu0
    %v313 = vunpack.c.l.b16 %v244
    %v314 = vunpack.c.l.b16 %v245
    %v315 = vunpack.c.l.b16 %v246
    %v316 = vpack.c.b16 %v314, %v313
    %v317 = vpack.c.b16 %v315, %v315
    %vm319 = vcmask 146432
    %v321 = vsel %vm319, %v248, 0
    %v324 = vsel %vm319, %v249, 0
    %v327 = vsel %vm319, %v250, 0
    %vm329 = vcmask 1040384
    %v331 = vsel %vm329, %v317, 0
    %333 = vmatpush.bf16.msra.mxu0 0
    %334 = vmatpush.bf16.msra.mxu0 0
    %335 = vmatpush.bf16.msra.mxu0 0
    %336 = vmatpush.bf16.msra.mxu0 0
    %337 = vmatpush.bf16.msra.mxu0 0
    %338 = vmatpush.bf16.msra.mxu0 0
    %339 = vmatpush.bf16.msra.mxu0 %v331
    %340 = vmatpush.bf16.msra.mxu0 %v316
    %341 = vmatmul.bf16.gmra.mxu0 %v321
    %v342 = vpop.f32.mrf.mxu0
    %v343 = vadd.f32 %v296, %v342
    %v344 = vpop.f32.mrf.mxu0
    %v345 = vadd.f32 %v298, %v344
    %346 = vmatmul.bf16.gmra.mxu0 %v324
    %v347 = vpop.f32.mrf.mxu0
    %v348 = vadd.f32 %v301, %v347
    %v349 = vpop.f32.mrf.mxu0
    %v350 = vadd.f32 %v303, %v349
    %351 = vmatmul.bf16.gmra.mxu0 %v327
    %v352 = vpop.f32.mrf.mxu0
    %v353 = vadd.f32 %v306, %v352
    %v354 = vpop.f32.mrf.mxu0
    %v355 = vadd.f32 %v308, %v354
    %356 = vdwg.mxu0
    %v357 = vld [vmem:[%s5 + $0x10] sm:$0x1]
    %v358 = vld [vmem:[#allocation4] sm:$0xf]
    %v359 = vld [vmem:[#allocation4 + $0x4] sm:$0xf]
    %v360 = vld [vmem:[#allocation4 + $0x8] sm:$0xf]
    %v361 = vld [vmem:[#allocation4 + $0xc] sm:$0xf]
    %v362 = vld [vmem:[#allocation4 + $0x10] sm:$0xf]
    %v363 = vpack.c.bf16 %v345, %v343
    %v364 = vpack.c.bf16 %v350, %v348
    %v365 = vpack.c.bf16 %v355, %v353
    %v366 = vperm.slane %v357, 0
    %v372 = vunpack.c.l.b16 %v358
    %v373 = vunpack.c.l.b16 %v359
    %v374 = vunpack.c.l.b16 %v360
    %v375 = vunpack.c.l.b16 %v361
    %v376 = vunpack.c.l.b16 %v362
    %v377 = vpack.c.b16 %v373, %v372
    %v378 = vpack.c.b16 %v375, %v374
    %v379 = vpack.c.b16 %v376, %v376
    %vm380 = vcmask 392192
    %v382 = vsel %vm380, %v377, 0
    %v385 = vsel %vm380, %v378, 0
    %v388 = vsel %vm380, %v379, 0
    %390 = vmatpush.bf16.msra.mxu0 0
    %391 = vmatpush.bf16.msra.mxu0 0
    %392 = vmatpush.bf16.msra.mxu0 0
    %393 = vmatpush.bf16.msra.mxu0 0
    %394 = vmatpush.bf16.msra.mxu0 0
    %395 = vmatpush.bf16.msra.mxu0 %v365
    %396 = vmatpush.bf16.msra.mxu0 %v364
    %397 = vmatpush.bf16.msra.mxu0 %v363
    %398 = vmatmul.bf16.gmra.mxu0 %v382
    %v399 = vpop.f32.mrf.mxu0
    %v400 = vadd.f32 %v366, %v399
    %v401 = vpop.f32.mrf.mxu0
    %v402 = vadd.f32 %v366, %v401
    %403 = vmatmul.bf16.gmra.mxu0 %v385
    %v404 = vpop.f32.mrf.mxu0
    %v405 = vadd.f32 %v366, %v404
    %v406 = vpop.f32.mrf.mxu0
    %v407 = vadd.f32 %v366, %v406
    %408 = vmatmul.bf16.gmra.mxu0 %v388
    %v409 = vpop.f32.mrf.mxu0
    %v410 = vadd.f32 %v366, %v409
    %v411 = vpop.f32.mrf.mxu0
    %412 = vdwg.mxu0
    %v413 = vmax.f32 %v400, 0.0
    %v414 = vmax.f32 %v402, 0.0
    %v415 = vmax.f32 %v405, 0.0
    %v416 = vmax.f32 %v407, 0.0
    %v417 = vmax.f32 %v410, 0.0
    %v418 = vld [vmem:[%s6 + $0x18] sm:$0xf]
    %v419 = vld [vmem:[%s6 + $0x1c] sm:$0xf]
    %v420 = vld [vmem:[%s6 + $0x20] sm:$0xf]
    %v421 = vld [vmem:[%s6 + $0x28] sm:$0xf]
    %v422 = vld [vmem:[%s6 + $0x2c] sm:$0xf]
    %v423 = vld [vmem:[%s6 + $0x30] sm:$0xf]
    %v424 = vpack.c.bf16 %v414, %v413
    %v425 = vpack.c.bf16 %v416, %v415
    %v426 = vpack.c.bf16 %v417, %v417
    %v430 = vunpack.c.l.b16 %v418
    %v431 = vunpack.c.l.b16 %v419
    %v432 = vunpack.c.l.b16 %v420
    %v433 = vpack.c.b16 %v431, %v430
    %v434 = vpack.c.b16 %v432, %v432
    %vm436 = vcmask 195584
    %v438 = vsel %vm436, %v424, 0
    %v441 = vsel %vm436, %v425, 0
    %v444 = vsel %vm436, %v426, 0
    %vm446 = vcmask 1043456
    %v448 = vsel %vm446, %v434, 0
    %450 = vmatpush.bf16.msra.mxu0 0
    %451 = vmatpush.bf16.msra.mxu0 0
    %452 = vmatpush.bf16.msra.mxu0 0
    %453 = vmatpush.bf16.msra.mxu0 0
    %454 = vmatpush.bf16.msra.mxu0 0
    %455 = vmatpush.bf16.msra.mxu0 0
    %456 = vmatpush.bf16.msra.mxu0 %v448
    %457 = vmatpush.bf16.msra.mxu0 %v433
    %458 = vmatmul.bf16.gmra.mxu0 %v438
    %v459 = vpop.f32.mrf.mxu0
    %v460 = vadd.f32 0.0, %v459
    %v461 = vpop.f32.mrf.mxu0
    %v462 = vadd.f32 0.0, %v461
    %463 = vmatmul.bf16.gmra.mxu0 %v441
    %v464 = vpop.f32.mrf.mxu0
    %v465 = vadd.f32 0.0, %v464
    %v466 = vpop.f32.mrf.mxu0
    %v467 = vadd.f32 0.0, %v466
    %468 = vmatmul.bf16.gmra.mxu0 %v444
    %v469 = vpop.f32.mrf.mxu0
    %v470 = vadd.f32 0.0, %v469
    %v471 = vpop.f32.mrf.mxu0
    %472 = vdwg.mxu0
    %v476 = vunpack.c.l.b16 %v421
    %v477 = vunpack.c.l.b16 %v422
    %v478 = vunpack.c.l.b16 %v423
    %v479 = vpack.c.b16 %v477, %v476
    %v480 = vpack.c.b16 %v478, %v478
    %v483 = vsel %vm446, %v480, 0
    %485 = vmatpush.bf16.msra.mxu0 0
    %486 = vmatpush.bf16.msra.mxu0 0
    %487 = vmatpush.bf16.msra.mxu0 0
    %488 = vmatpush.bf16.msra.mxu0 0
    %489 = vmatpush.bf16.msra.mxu0 0
    %490 = vmatpush.bf16.msra.mxu0 0
    %491 = vmatpush.bf16.msra.mxu0 %v483
    %492 = vmatpush.bf16.msra.mxu0 %v479
    %493 = vmatmul.bf16.gmra.mxu0 %v438
    %v494 = vpop.f32.mrf.mxu0
    %v495 = vadd.f32 0.0, %v494
    %v496 = vpop.f32.mrf.mxu0
    %v497 = vadd.f32 0.0, %v496
    %498 = vmatmul.bf16.gmra.mxu0 %v441
    %v499 = vpop.f32.mrf.mxu0
    %v500 = vadd.f32 0.0, %v499
    %v501 = vpop.f32.mrf.mxu0
    %v502 = vadd.f32 0.0, %v501
    %503 = vmatmul.bf16.gmra.mxu0 %v444
    %v504 = vpop.f32.mrf.mxu0
    %v505 = vadd.f32 0.0, %v504
    %v506 = vpop.f32.mrf.mxu0
    %507 = vdwg.mxu0
    %v508 = vld [vmem:[#allocation6] sm:$0xf]
    %v509 = vld [vmem:[#allocation6 + $0x4] sm:$0xf]
    %v510 = vld [vmem:[#allocation6 + $0x8] sm:$0xf]
    %v511 = vld [vmem:[#allocation6 + $0xc] sm:$0xf]
    %v512 = vld [vmem:[#allocation6 + $0x10] sm:$0xf]
    %v513 = vpack.c.bf16 %v462, %v460
    %v514 = vpack.c.bf16 %v467, %v465
    %v515 = vpack.c.bf16 %v470, %v470
    %v516 = vld [vmem:[%s5 + $0x18] sm:$0x1]
    %v522 = vunpack.c.l.b16 %v508
    %v523 = vunpack.c.l.b16 %v509
    %v524 = vunpack.c.l.b16 %v510
    %v525 = vunpack.c.l.b16 %v511
    %v526 = vunpack.c.l.b16 %v512
    %v527 = vpack.c.b16 %v523, %v522
    %v528 = vpack.c.b16 %v525, %v524
    %v529 = vpack.c.b16 %v526, %v526
    %vm530 = vcmask 326656
    %v532 = vsel %vm530, %v527, 0
    %v535 = vsel %vm530, %v528, 0
    %v538 = vsel %vm530, %v529, 0
    %v541 = vsel %vm446, %v515, 0
    %543 = vmatpush.bf16.msra.mxu0 0
    %544 = vmatpush.bf16.msra.mxu0 0
    %545 = vmatpush.bf16.msra.mxu0 0
    %546 = vmatpush.bf16.msra.mxu0 0
    %547 = vmatpush.bf16.msra.mxu0 0
    %548 = vmatpush.bf16.msra.mxu0 %v541
    %549 = vmatpush.bf16.msra.mxu0 %v514
    %550 = vmatpush.bf16.msra.mxu0 %v513
    %551 = vmatmul.bf16.gmra.mxu0 %v532
    %v552 = vpop.f32.mrf.mxu0
    %v553 = vadd.f32 %v495, %v552
    %v554 = vpop.f32.mrf.mxu0
    %v555 = vadd.f32 %v497, %v554
    %556 = vmatmul.bf16.gmra.mxu0 %v535
    %v557 = vpop.f32.mrf.mxu0
    %v558 = vadd.f32 %v500, %v557
    %v559 = vpop.f32.mrf.mxu0
    %v560 = vadd.f32 %v502, %v559
    %561 = vmatmul.bf16.gmra.mxu0 %v538
    %v562 = vpop.f32.mrf.mxu0
    %v563 = vadd.f32 %v505, %v562
    %v564 = vpop.f32.mrf.mxu0
    %565 = vdwg.mxu0
    %v566 = vperm.slane %v516, 0
    %v567 = vadd.f32 %v553, %v566
    %v568 = vadd.f32 %v555, %v566
    %v569 = vadd.f32 %v558, %v566
    %v570 = vadd.f32 %v560, %v566
    %v571 = vadd.f32 %v563, %v566
    %v572 = vmax.f32 %v567, 0.0
    %v573 = vmax.f32 %v568, 0.0
    %v574 = vmax.f32 %v569, 0.0
    %v575 = vmax.f32 %v570, 0.0
    %v576 = vmax.f32 %v571, 0.0
    %577 = vst.msk [vmem:[%s7] sm:$0xff] %vm436, %v572
    %578 = vst.msk [vmem:[%s7 + $0x8] sm:$0xff] %vm436, %v573
    %579 = vst.msk [vmem:[%s7 + $0x10] sm:$0xff] %vm436, %v574
    %580 = vst.msk [vmem:[%s7 + $0x18] sm:$0xff] %vm436, %v575
    %581 = vst.msk [vmem:[%s7 + $0x20] sm:$0xff] %vm436, %v576
    // Predicated region
    $region42: #{forward.1} parent=1 // pred_check
      _
    $region43: #{forward.1} parent=1 // pred_check_branch
      %583 = sbr.rel (0) target = $region45
    $region44: #{forward.1} parent=1 // pred_region
      _
    $region45: #{forward.1} parent=1 // pred_fallthru
      _
    // Predicated region
    $region46: #{forward.1} parent=1 // pred_check
      _
    $region47: #{forward.1} parent=1 // pred_check_branch
      %585 = sbr.rel (0) target = $region49
    $region48: #{forward.1} parent=1 // pred_region
      _
    $region49: #{forward.1} parent=1 // pred_fallthru
      _
    %586 = vsyncpa [#allocation3], 1
    %587 = vsyncpa [#allocation5], 1

</llo_original>
